<compile_context>
chip_gen: v5e
topology: v5e:2x2
jax: 0.10.0
libtpu: 0.0.40
codegen_flags: <defaults>
</compile_context>

<pallas_src>
import functools
from typing import NamedTuple, Optional

import jax
import jax.numpy as jnp
from jax import lax
from jax.experimental import pallas as pl
from jax.experimental.pallas import tpu as pltpu


def _round_up(x, m):
    return ((x + m - 1) // m) * m


def _pick_tile(dim, max_tile):
    """Pick a multiple-of-128 tile <= max_tile minimizing padding of `dim`.

    Ties are broken toward the larger tile (fewer grid steps).
    Returns (tile, padded_dim).
    """
    max_tile = max(128, (max_tile // 128) * 128)
    best_t, best_pad = 128, _round_up(dim, 128)
    t = 256
    while t <= max_tile:
        pad = _round_up(dim, t)
        if pad < best_pad or (pad == best_pad and t > best_t):
            best_t, best_pad = t, pad
        t += 128
    return best_t, best_pad


class LinearParams(NamedTuple):
    """Pre-padded, pre-transposed parameters (built once, reused per call)."""
    wt: jax.Array          # (I_pad, O_pad) = pad(w).T  -- MXU-native layout
    b: jax.Array           # (1, O_pad) padded bias
    out_features: int      # O
    in_features: int       # I
    to: int                # output tile
    tk: int                # contraction tile


def prepare_linear(w, b, *, to_max=512, tk_max=4096, weight_dtype=jnp.float32):
    """One-time layout prep for the weights of a Linear(output, input) module.

    w: (output, input), b: (output,).  Pads to tile multiples and transposes
    W to (I_pad, O_pad) so the kernel never relayouts the streamed tile.
    """
    O, I = w.shape
    to, O_pad = _pick_tile(O, to_max)
    tk, I_pad = _pick_tile(I, tk_max)
    wt = jnp.pad(w.astype(weight_dtype), ((0, O_pad - O), (0, I_pad - I))).T
    b_p = jnp.pad(b.astype(jnp.float32).reshape(1, O), ((0, 0), (0, O_pad - O)))
    return LinearParams(wt, b_p, O, I, to, tk)


def _linear_kernel(x_ref, wt_ref, b_ref, o_ref, *, tk, x_resident):
    # x_ref : (1, I_pad) if x_resident else (1, tk)
    # wt_ref: (tk, to)   streamed W tile (pre-transposed, MXU-native)
    # b_ref : (1, to)
    # o_ref : (1, to) f32 -- VMEM-resident across the K axis, doubles as acc.
    k = pl.program_id(1)

    @pl.when(k == 0)
    def _():
        o_ref[...] = b_ref[...]            # bias applied exactly once

    if x_resident:
        start = pl.multiple_of(k * tk, 128)
        x_blk = x_ref[:, pl.ds(start, tk)]
    else:
        x_blk = x_ref[...]

    if x_blk.dtype != wt_ref.dtype:        # only for narrow-weight configs
        x_blk = x_blk.astype(wt_ref.dtype)

    # Plain (1, tk) x (tk, to) matmul -> (1, to); f32 accumulation on the MXU.
    o_ref[...] += jnp.dot(
        x_blk,
        wt_ref[...],
        preferred_element_type=jnp.float32,
        precision=lax.Precision.HIGHEST,   # keep full f32 numerics of the module
    )


def linear_forward(params: LinearParams, x, *,
                   core_parallel=False,
                   x_resident: Optional[bool] = None):
    """Pallas equivalent of Linear.forward: w.mv(x.view(-1)) + b.

    params: from prepare_linear (pad/transpose of W done once, not per call)
    x:      arbitrary-shape float array, flattened internally
    core_parallel: set True on v7x (2 TCs) when the O grid dim is even to
                   stream half of W per TensorCore (pltpu.CORE_PARALLEL).
    returns: (output,) float32
    """
    wt, b_p, O, I, to, tk = params
    I_pad, O_pad = wt.shape

    x_flat = x.reshape(1, -1).astype(jnp.float32)
    assert x_flat.shape[1] == I, "flattened input size must match w's input dim"
    x_p = jnp.pad(x_flat, ((0, 0), (0, I_pad - I)))   # tiny, fine per call

    if x_resident is None:
        x_resident = (I_pad * 4) <= (4 << 20)         # keep whole x in VMEM

    if x_resident:
        x_spec = pl.BlockSpec((1, I_pad), lambda o, k: (0, 0))
    else:
        x_spec = pl.BlockSpec((1, tk), lambda o, k: (0, k))

    grid = (O_pad // to, I_pad // tk)
    o_sem = pltpu.CORE_PARALLEL if core_parallel else "parallel"

    out = pl.pallas_call(
        functools.partial(_linear_kernel, tk=tk, x_resident=x_resident),
        out_shape=jax.ShapeDtypeStruct((1, O_pad), jnp.float32),
        grid_spec=pltpu.PrefetchScalarGridSpec(
            num_scalar_prefetch=0,
            grid=grid,
            in_specs=[
                x_spec,                                       # x (resident or chunked)
                pl.BlockSpec((tk, to), lambda o, k: (k, o)),  # W tile (streamed)
                pl.BlockSpec((1, to), lambda o, k: (0, o)),   # bias chunk
            ],
            out_specs=pl.BlockSpec((1, to), lambda o, k: (0, o)),  # resident acc
        ),
        compiler_params=pltpu.CompilerParams(
            dimension_semantics=(o_sem, "arbitrary"),
            # Defaults (TO=512, TK=4096 f32) -> 8 MiB/W-buffer, 16 MiB
            # double-buffered + x/bias/out: well under 48 MiB on every
            # generation (v7x: 64 MiB physical per TC, headroom left for Mosaic).
            vmem_limit_bytes=48 * 1024 * 1024,
        ),
    )(x_p, wt, b_p)
    return out[0, :O]


if __name__ == "__main__":
    key = jax.random.PRNGKey(0)

    # --- Case 1: the module's toy sizes (input=32, output=16, std=0.1) -----
    INPUT, OUTPUT, STD = 32, 16, 0.1
    k_w, k_b, k_x, key = jax.random.split(key, 4)
    w = STD * jax.random.normal(k_w, (OUTPUT, INPUT), dtype=jnp.float32)
    b = STD * jax.random.normal(k_b, (OUTPUT,), dtype=jnp.float32)
    x = jax.random.normal(k_x, (INPUT,), dtype=jnp.float32)

    params = prepare_linear(w, b)                   # W pad/transpose done once
    y = jax.block_until_ready(linear_forward(params, x))
    y_ref = w @ x.reshape(-1) + b
    assert y.shape == (OUTPUT,)
    assert jnp.allclose(y, y_ref, atol=1e-5, rtol=1e-5)

    # --- Case 2: non-aligned sizes + small tile caps to exercise the grid --
    # I=600 -> tk=128 (128-rounding: 640 padded, 7% waste vs 28% at 256),
    # O=200 -> to=128, grid (2, 5); also exercises the chunked-x path.
    I2, O2 = 600, 200
    k_w2, k_b2, k_x2, key = jax.random.split(key, 4)
    w2 = STD * jax.random.normal(k_w2, (O2, I2), dtype=jnp.float32)
    b2 = STD * jax.random.normal(k_b2, (O2,), dtype=jnp.float32)
    x2 = jax.random.normal(k_x2, (3, 200), dtype=jnp.float32)  # flattens to 600

    params2 = prepare_linear(w2, b2, to_max=128, tk_max=256)
    y2 = jax.block_until_ready(linear_forward(params2, x2, x_resident=False))
    y2_ref = w2 @ x2.reshape(-1) + b2
    assert y2.shape == (O2,)
    assert jnp.allclose(y2, y2_ref, atol=1e-4, rtol=1e-4)

    # Reuse of prepared params across calls (no repeated W pad/transpose).
    x3 = jax.random.normal(key, (INPUT,), dtype=jnp.float32)
    y3 = jax.block_until_ready(linear_forward(params, x3))
    assert jnp.allclose(y3, w @ x3 + b, atol=1e-5, rtol=1e-5)

    # TODO(synk): backward() (dw/db/dx_previous) is a separate op set and is
    # not implemented here; only the forward pass is translated.
    print("KERNEL_OK")
</pallas_src>

<mosaic_0001>
module attributes {stable_mosaic.version = 11 : i64} {
  func.func @_linear_kernel(%arg0: i32, %arg1: i32, %arg2: memref<1x128xf32, #tpu.memory_space<vmem>>, %arg3: memref<128x128xf32, #tpu.memory_space<vmem>>, %arg4: memref<1x128xf32, #tpu.memory_space<vmem>>, %arg5: memref<1x128xf32, #tpu.memory_space<vmem>>) attributes {dimension_semantics = [#tpu.dimension_semantics<parallel>, #tpu.dimension_semantics<arbitrary>], iteration_bounds = array<i64: 1, 1>, scalar_prefetch = 0 : i64, scratch_operands = 0 : i64, tpu.core_type = #tpu.core_type<tc>, window_params = [{pipeline_mode = #tpu.pipeline_mode<synchronous>, transform_indices = @transform_0, window_bounds = array<i64: 1, 128>}, {transform_indices = @transform_1, window_bounds = array<i64: 128, 128>}, {transform_indices = @transform_2, window_bounds = array<i64: 1, 128>}, {transform_indices = @transform_3, window_bounds = array<i64: 1, 128>}]} {
    %c0_i32 = arith.constant 0 : i32
    %0 = arith.cmpi eq, %arg1, %c0_i32 : i32
    %1 = arith.extui %0 : i1 to i32
    %c0_i32_0 = arith.constant 0 : i32
    %2 = arith.cmpi ne, %1, %c0_i32_0 : i32
    scf.if %2 {
      %c0_7 = arith.constant 0 : index
      %c0_8 = arith.constant 0 : index
      %12 = vector.load %arg4[%c0_7, %c0_8] : memref<1x128xf32, #tpu.memory_space<vmem>>, vector<1x128xf32>
      %c0_9 = arith.constant 0 : index
      %c0_10 = arith.constant 0 : index
      %13 = vector.load %arg5[%c0_9, %c0_10] : memref<1x128xf32, #tpu.memory_space<vmem>>, vector<1x128xf32>
      tpu.vector_store %arg5[%c0_9, %c0_10], %12 {strides = array<i32>} : memref<1x128xf32, #tpu.memory_space<vmem>>, vector<1x128xf32>,
    } else {
    }
    %c128_i32 = arith.constant 128 : i32
    %3 = arith.muli %arg1, %c128_i32 : i32
    %4 = tpu.assume_multiple %3, 128 : i32
    %c0 = arith.constant 0 : index
    %5 = arith.index_cast %4 : i32 to index
    %6 = vector.load %arg2[%c0, %5] : memref<1x128xf32, #tpu.memory_space<vmem>>, vector<1x128xf32>
    %c0_1 = arith.constant 0 : index
    %c0_2 = arith.constant 0 : index
    %7 = vector.load %arg5[%c0_1, %c0_2] : memref<1x128xf32, #tpu.memory_space<vmem>>, vector<1x128xf32>
    %c0_3 = arith.constant 0 : index
    %c0_4 = arith.constant 0 : index
    %8 = vector.load %arg3[%c0_3, %c0_4] : memref<128x128xf32, #tpu.memory_space<vmem>>, vector<128x128xf32>
    %cst = arith.constant dense<0.000000e+00> : vector<1x128xf32>
    %9 = tpu.matmul %6, %8, %cst {dimension_numbers = #tpu.dot_dimension_numbers<[1], [0], [0], [1], [0, 0, 1, 1], [], []>, precision = #tpu.contract_precision<fp32>} : vector<1x128xf32>, vector<128x128xf32>, vector<1x128xf32> -> vector<1x128xf32>
    %10 = arith.addf %7, %9 : vector<1x128xf32>
    %c0_5 = arith.constant 0 : index
    %c0_6 = arith.constant 0 : index
    %11 = vector.load %arg5[%c0_5, %c0_6] : memref<1x128xf32, #tpu.memory_space<vmem>>, vector<1x128xf32>
    tpu.vector_store %arg5[%c0_5, %c0_6], %10 {strides = array<i32>} : memref<1x128xf32, #tpu.memory_space<vmem>>, vector<1x128xf32>,
    return
  }
  func.func @transform_0(%arg0: i32, %arg1: i32) -> (i32, i32) {
    %c0_i32 = arith.constant 0 : i32
    %c0_i32_0 = arith.constant 0 : i32
    %c0_i32_1 = arith.constant 0 : i32
    return %c0_i32, %c0_i32_0 : i32, i32
  }
  func.func @transform_1(%arg0: i32, %arg1: i32) -> (i32, i32) {
    %c0_i32 = arith.constant 0 : i32
    return %arg1, %arg0 : i32, i32
  }
  func.func @transform_2(%arg0: i32, %arg1: i32) -> (i32, i32) {
    %c0_i32 = arith.constant 0 : i32
    %c0_i32_0 = arith.constant 0 : i32
    return %c0_i32, %arg0 : i32, i32
  }
  func.func @transform_3(%arg0: i32, %arg1: i32) -> (i32, i32) {
    %c0_i32 = arith.constant 0 : i32
    %c0_i32_0 = arith.constant 0 : i32
    return %c0_i32, %arg0 : i32, i32
  }
}

</mosaic_0001>

<llo_original>
// kernel: tpu_custom_call.1
$region0: #{tpu_custom_call.1}
  #allocation0 [shape = 'u32[]', space=smem, size = 0x4, offset = 0x4, fixed_abs, tag = 'smem constant byte address 0x4 - core index']
  #allocation1 [shape = 'u32[72,128]{1,0:T(1,128)}', space=vmem, size = 0x9000, scoped, tag = 'internal scratch']
  %s0 = inlined_call_operand.hbm [shape: f32[1,128], index: 0, kind: input, shape index: {}]
  %s1 = inlined_call_operand.hbm [shape: f32[128,128], index: 1, kind: input, shape index: {}]
  %s2 = inlined_call_operand.vmem [shape: f32[1,128], index: 2, kind: input, shape index: {}]
  %s3 = inlined_call_operand.hbm [shape: f32[1,128], index: 3, kind: output, shape index: {}]
  %s4 = sld [smem:[#allocation0]]
  $region34: #{tpu_custom_call.1} parent=0
    _
  %s6 = ssub.s32 1, %s4
  %s7 = scalar_select 0, %s6, %s4
  $region1: #{tpu_custom_call.1} parent=0
    #allocation2 [shape = 'u8[512]{0}', space=vmem, size = 0x400, scoped, tag = 'input window, operand 0, single buffered']
    #allocation3 [shape = 's32[1]{0}', space=sflag, size = 0x4, scoped, tag = 'scoped memory for tpu_custom_call.1']
    #allocation4 [shape = 's32[1]{0}', space=sflag, size = 0x4, scoped, tag = 'scoped memory for tpu_custom_call.1']
    #allocation5 [shape = 'u8[65536]{0}', space=vmem, size = 0x10000, scoped, tag = 'input window, operand 1, single buffered']
    #allocation6 [shape = 's32[1]{0}', space=sflag, size = 0x4, scoped, tag = 'scoped memory for tpu_custom_call.1']
    #allocation7 [shape = 'u8[512]{0}', space=vmem, size = 0x400, scoped, tag = 'output window, operand 0, single buffered']
    %8 = vsyncpa [#allocation3], 0
    %9 = vsyncpa [#allocation6], 0
    %10 = vsyncpa [#allocation4], 0
    // Predicated region
    $region2: #{tpu_custom_call.1} parent=1 // pred_check
      _
    $region3: #{tpu_custom_call.1} parent=1 // pred_check_branch
      %12 = sbr.rel (0) target = $region5
    $region4: #{tpu_custom_call.1} parent=1 // pred_region
      %14 = vsyncadd [#allocation3], 0
      %s16 = sshll.u32 %s0, 4
      %s17 = int_to_ptr.hbm [resolvable:$true] %s16
      %s18 = sshll.u32 [#allocation2], 4
      %s19 = int_to_ptr.vmem [resolvable:$true] %s18
      %21 = dma.hbm_to_vmem [thread:$0]  %s17, 16, %s19, [#allocation3]
    $region5: #{tpu_custom_call.1} parent=1 // pred_fallthru
      _
    // Predicated region
    $region6: #{tpu_custom_call.1} parent=1 // pred_check
      _
    $region7: #{tpu_custom_call.1} parent=1 // pred_check_branch
      %23 = sbr.rel (0) target = $region9
    $region8: #{tpu_custom_call.1} parent=1 // pred_region
      %25 = vsyncadd [#allocation6], 0
      %s26 = sshll.u32 %s1, 4
      %s27 = int_to_ptr.hbm [resolvable:$true] %s26
      %s28 = sshll.u32 [#allocation5], 4
      %s29 = int_to_ptr.vmem [resolvable:$true] %s28
      %34 = dma.hbm_to_vmem [thread:$0]  %s27, 2048, %s29, [#allocation6], 128, 128, 8
    $region9: #{tpu_custom_call.1} parent=1 // pred_fallthru
      _
    // Predicated region
    $region10: #{tpu_custom_call.1} parent=1 // pred_check
      _
    $region11: #{tpu_custom_call.1} parent=1 // pred_check_branch
      %36 = sbr.rel (0) target = $region13
    $region12: #{tpu_custom_call.1} parent=1 // pred_region
      _
    $region13: #{tpu_custom_call.1} parent=1 // pred_fallthru
      _
    // Predicated region
    $region14: #{tpu_custom_call.1} parent=1 // pred_check
      _
    $region15: #{tpu_custom_call.1} parent=1 // pred_check_branch
      %38 = sbr.rel (0) target = $region17
    $region16: #{tpu_custom_call.1} parent=1 // pred_region
      %40 = dma.done [#allocation3], 16
    $region17: #{tpu_custom_call.1} parent=1 // pred_fallthru
      _
    // Predicated region
    $region18: #{tpu_custom_call.1} parent=1 // pred_check
      _
    $region19: #{tpu_custom_call.1} parent=1 // pred_check_branch
      %42 = sbr.rel (0) target = $region21
    $region20: #{tpu_custom_call.1} parent=1 // pred_region
      %44 = dma.done [#allocation6], 2048
    $region21: #{tpu_custom_call.1} parent=1 // pred_fallthru
      _
    %p45 = scmp.eq.s32.totalorder 0, 0
    // Predicated region
    $region22: #{tpu_custom_call.1} parent=1 // pred_check
      %p46 = pneg %p45
    $region23: #{tpu_custom_call.1} parent=1 // pred_check_branch
      %48 = sbr.rel (%p46) target = $region25
    $region24: #{tpu_custom_call.1} parent=1 // pred_region
      %v49 = vld [vmem:[%s2] sm:$0x1]
      %50 = vst [vmem:[#allocation7] sm:$0x1] %v49
    $region25: #{tpu_custom_call.1} parent=1 // pred_fallthru
      _
    %s51 = smul.u32 0, 128
    %s52 = sshra.s32 %s51, 7
    %s53 = sand.u32 %s51, 127
    %s54 = scalar_lea.vmem [#allocation2], %s52
    %v55 = vld [vmem:[%s54] sm:$0x1]
    %v56 = vld [vmem:[#allocation7] sm:$0x1]
    %v57 = vld [vmem:[#allocation5] sm:$0xff]
    %v58 = vld [vmem:[#allocation5 + $0x8] sm:$0xff]
    %v59 = vld [vmem:[#allocation5 + $0x10] sm:$0xff]
    %v60 = vld [vmem:[#allocation5 + $0x18] sm:$0xff]
    %v61 = vld [vmem:[#allocation5 + $0x20] sm:$0xff]
    %v62 = vld [vmem:[#allocation5 + $0x28] sm:$0xff]
    %v63 = vld [vmem:[#allocation5 + $0x30] sm:$0xff]
    %v64 = vld [vmem:[#allocation5 + $0x38] sm:$0xff]
    %v65 = vld [vmem:[#allocation5 + $0x40] sm:$0xff]
    %v66 = vld [vmem:[#allocation5 + $0x48] sm:$0xff]
    %v67 = vld [vmem:[#allocation5 + $0x50] sm:$0xff]
    %v68 = vld [vmem:[#allocation5 + $0x58] sm:$0xff]
    %v69 = vld [vmem:[#allocation5 + $0x60] sm:$0xff]
    %v70 = vld [vmem:[#allocation5 + $0x68] sm:$0xff]
    %v71 = vld [vmem:[#allocation5 + $0x70] sm:$0xff]
    %v72 = vld [vmem:[#allocation5 + $0x78] sm:$0xff]
    %v73 = vand.u32 %v72, 4294901760
    %74 = vmatpush.msra.mxu0 %v73
    %v75 = vand.u32 %v71, 4294901760
    %76 = vmatpush.msra.mxu0 %v75
    %v77 = vand.u32 %v70, 4294901760
    %78 = vmatpush.msra.mxu0 %v77
    %v79 = vand.u32 %v69, 4294901760
    %80 = vmatpush.msra.mxu0 %v79
    %v81 = vand.u32 %v68, 4294901760
    %82 = vmatpush.msra.mxu0 %v81
    %v83 = vand.u32 %v67, 4294901760
    %84 = vmatpush.msra.mxu0 %v83
    %v85 = vand.u32 %v66, 4294901760
    %86 = vmatpush.msra.mxu0 %v85
    %v87 = vand.u32 %v65, 4294901760
    %88 = vmatpush.msra.mxu0 %v87
    %v89 = vand.u32 %v64, 4294901760
    %90 = vmatpush.msra.mxu0 %v89
    %v91 = vand.u32 %v63, 4294901760
    %92 = vmatpush.msra.mxu0 %v91
    %v93 = vand.u32 %v62, 4294901760
    %94 = vmatpush.msra.mxu0 %v93
    %v95 = vand.u32 %v61, 4294901760
    %96 = vmatpush.msra.mxu0 %v95
    %v97 = vand.u32 %v60, 4294901760
    %98 = vmatpush.msra.mxu0 %v97
    %v99 = vand.u32 %v59, 4294901760
    %100 = vmatpush.msra.mxu0 %v99
    %v101 = vand.u32 %v58, 4294901760
    %102 = vmatpush.msra.mxu0 %v101
    %v103 = vand.u32 %v57, 4294901760
    %104 = vmatpush.msra.mxu0 %v103
    %v105 = vand.u32 %v55, 4294901760
    %v106 = vsub.f32 %v55, %v105
    %v107 = vand.u32 %v106, 4294901760
    %v108 = vsub.f32 %v106, %v107
    %v109 = vand.u32 %v108, 4294901760
    %110 = vmatmul.f32.gmra.mxu0 %v109
    %v111 = vpop.f32.mrf.mxu0
    %v112 = vadd.f32 0.0, %v111
    %113 = vdwg.mxu0
    %v114 = vand.u32 %v72, 4294901760
    %v115 = vsub.f32 %v72, %v114
    %v116 = vand.u32 %v115, 4294901760
    %v117 = vsub.f32 %v115, %v116
    %v118 = vand.u32 %v117, 4294901760
    %119 = vmatpush.msra.mxu0 %v118
    %v120 = vand.u32 %v71, 4294901760
    %v121 = vsub.f32 %v71, %v120
    %v122 = vand.u32 %v121, 4294901760
    %v123 = vsub.f32 %v121, %v122
    %v124 = vand.u32 %v123, 4294901760
    %125 = vmatpush.msra.mxu0 %v124
    %v126 = vand.u32 %v70, 4294901760
    %v127 = vsub.f32 %v70, %v126
    %v128 = vand.u32 %v127, 4294901760
    %v129 = vsub.f32 %v127, %v128
    %v130 = vand.u32 %v129, 4294901760
    %131 = vmatpush.msra.mxu0 %v130
    %v132 = vand.u32 %v69, 4294901760
    %v133 = vsub.f32 %v69, %v132
    %v134 = vand.u32 %v133, 4294901760
    %v135 = vsub.f32 %v133, %v134
    %v136 = vand.u32 %v135, 4294901760
    %137 = vmatpush.msra.mxu0 %v136
    %v138 = vand.u32 %v68, 4294901760
    %v139 = vsub.f32 %v68, %v138
    %v140 = vand.u32 %v139, 4294901760
    %v141 = vsub.f32 %v139, %v140
    %v142 = vand.u32 %v141, 4294901760
    %143 = vmatpush.msra.mxu0 %v142
    %v144 = vand.u32 %v67, 4294901760
    %v145 = vsub.f32 %v67, %v144
    %v146 = vand.u32 %v145, 4294901760
    %v147 = vsub.f32 %v145, %v146
    %v148 = vand.u32 %v147, 4294901760
    %149 = vmatpush.msra.mxu0 %v148
    %v150 = vand.u32 %v66, 4294901760
    %v151 = vsub.f32 %v66, %v150
    %v152 = vand.u32 %v151, 4294901760
    %v153 = vsub.f32 %v151, %v152
    %v154 = vand.u32 %v153, 4294901760
    %155 = vmatpush.msra.mxu0 %v154
    %v156 = vand.u32 %v65, 4294901760
    %v157 = vsub.f32 %v65, %v156
    %v158 = vand.u32 %v157, 4294901760
    %v159 = vsub.f32 %v157, %v158
    %v160 = vand.u32 %v159, 4294901760
    %161 = vmatpush.msra.mxu0 %v160
    %v162 = vand.u32 %v64, 4294901760
    %v163 = vsub.f32 %v64, %v162
    %v164 = vand.u32 %v163, 4294901760
    %v165 = vsub.f32 %v163, %v164
    %v166 = vand.u32 %v165, 4294901760
    %167 = vmatpush.msra.mxu0 %v166
    %v168 = vand.u32 %v63, 4294901760
    %v169 = vsub.f32 %v63, %v168
    %v170 = vand.u32 %v169, 4294901760
    %v171 = vsub.f32 %v169, %v170
    %v172 = vand.u32 %v171, 4294901760
    %173 = vmatpush.msra.mxu0 %v172
    %v174 = vand.u32 %v62, 4294901760
    %v175 = vsub.f32 %v62, %v174
    %v176 = vand.u32 %v175, 4294901760
    %v177 = vsub.f32 %v175, %v176
    %v178 = vand.u32 %v177, 4294901760
    %179 = vmatpush.msra.mxu0 %v178
    %v180 = vand.u32 %v61, 4294901760
    %v181 = vsub.f32 %v61, %v180
    %v182 = vand.u32 %v181, 4294901760
    %v183 = vsub.f32 %v181, %v182
    %v184 = vand.u32 %v183, 4294901760
    %185 = vmatpush.msra.mxu0 %v184
    %v186 = vand.u32 %v60, 4294901760
    %v187 = vsub.f32 %v60, %v186
    %v188 = vand.u32 %v187, 4294901760
    %v189 = vsub.f32 %v187, %v188
    %v190 = vand.u32 %v189, 4294901760
    %191 = vmatpush.msra.mxu0 %v190
    %v192 = vand.u32 %v59, 4294901760
    %v193 = vsub.f32 %v59, %v192
    %v194 = vand.u32 %v193, 4294901760
    %v195 = vsub.f32 %v193, %v194
    %v196 = vand.u32 %v195, 4294901760
    %197 = vmatpush.msra.mxu0 %v196
    %v198 = vand.u32 %v58, 4294901760
    %v199 = vsub.f32 %v58, %v198
    %v200 = vand.u32 %v199, 4294901760
    %v201 = vsub.f32 %v199, %v200
    %v202 = vand.u32 %v201, 4294901760
    %203 = vmatpush.msra.mxu0 %v202
    %v204 = vand.u32 %v57, 4294901760
    %v205 = vsub.f32 %v57, %v204
    %v206 = vand.u32 %v205, 4294901760
    %v207 = vsub.f32 %v205, %v206
    %v208 = vand.u32 %v207, 4294901760
    %209 = vmatpush.msra.mxu0 %v208
    %v210 = vand.u32 %v55, 4294901760
    %211 = vmatmul.f32.gmra.mxu0 %v210
    %v212 = vpop.f32.mrf.mxu0
    %v213 = vadd.f32 %v112, %v212
    %214 = vdwg.mxu0
    %v215 = vand.u32 %v72, 4294901760
    %v216 = vsub.f32 %v72, %v215
    %217 = vmatpush.msra.mxu0 %v216
    %v218 = vand.u32 %v71, 4294901760
    %v219 = vsub.f32 %v71, %v218
    %220 = vmatpush.msra.mxu0 %v219
    %v221 = vand.u32 %v70, 4294901760
    %v222 = vsub.f32 %v70, %v221
    %223 = vmatpush.msra.mxu0 %v222
    %v224 = vand.u32 %v69, 4294901760
    %v225 = vsub.f32 %v69, %v224
    %226 = vmatpush.msra.mxu0 %v225
    %v227 = vand.u32 %v68, 4294901760
    %v228 = vsub.f32 %v68, %v227
    %229 = vmatpush.msra.mxu0 %v228
    %v230 = vand.u32 %v67, 4294901760
    %v231 = vsub.f32 %v67, %v230
    %232 = vmatpush.msra.mxu0 %v231
    %v233 = vand.u32 %v66, 4294901760
    %v234 = vsub.f32 %v66, %v233
    %235 = vmatpush.msra.mxu0 %v234
    %v236 = vand.u32 %v65, 4294901760
    %v237 = vsub.f32 %v65, %v236
    %238 = vmatpush.msra.mxu0 %v237
    %v239 = vand.u32 %v64, 4294901760
    %v240 = vsub.f32 %v64, %v239
    %241 = vmatpush.msra.mxu0 %v240
    %v242 = vand.u32 %v63, 4294901760
    %v243 = vsub.f32 %v63, %v242
    %244 = vmatpush.msra.mxu0 %v243
    %v245 = vand.u32 %v62, 4294901760
    %v246 = vsub.f32 %v62, %v245
    %247 = vmatpush.msra.mxu0 %v246
    %v248 = vand.u32 %v61, 4294901760
    %v249 = vsub.f32 %v61, %v248
    %250 = vmatpush.msra.mxu0 %v249
    %v251 = vand.u32 %v60, 4294901760
    %v252 = vsub.f32 %v60, %v251
    %253 = vmatpush.msra.mxu0 %v252
    %v254 = vand.u32 %v59, 4294901760
    %v255 = vsub.f32 %v59, %v254
    %256 = vmatpush.msra.mxu0 %v255
    %v257 = vand.u32 %v58, 4294901760
    %v258 = vsub.f32 %v58, %v257
    %259 = vmatpush.msra.mxu0 %v258
    %v260 = vand.u32 %v57, 4294901760
    %v261 = vsub.f32 %v57, %v260
    %262 = vmatpush.msra.mxu0 %v261
    %v263 = vand.u32 %v55, 4294901760
    %v264 = vsub.f32 %v55, %v263
    %265 = vmatmul.f32.gmra.mxu0 %v264
    %v266 = vpop.f32.mrf.mxu0
    %v267 = vadd.f32 %v213, %v266
    %268 = vdwg.mxu0
    %v269 = vand.u32 %v72, 4294901760
    %270 = vmatpush.msra.mxu0 %v269
    %v271 = vand.u32 %v71, 4294901760
    %272 = vmatpush.msra.mxu0 %v271
    %v273 = vand.u32 %v70, 4294901760
    %274 = vmatpush.msra.mxu0 %v273
    %v275 = vand.u32 %v69, 4294901760
    %276 = vmatpush.msra.mxu0 %v275
    %v277 = vand.u32 %v68, 4294901760
    %278 = vmatpush.msra.mxu0 %v277
    %v279 = vand.u32 %v67, 4294901760
    %280 = vmatpush.msra.mxu0 %v279
    %v281 = vand.u32 %v66, 4294901760
    %282 = vmatpush.msra.mxu0 %v281
    %v283 = vand.u32 %v65, 4294901760
    %284 = vmatpush.msra.mxu0 %v283
    %v285 = vand.u32 %v64, 4294901760
    %286 = vmatpush.msra.mxu0 %v285
    %v287 = vand.u32 %v63, 4294901760
    %288 = vmatpush.msra.mxu0 %v287
    %v289 = vand.u32 %v62, 4294901760
    %290 = vmatpush.msra.mxu0 %v289
    %v291 = vand.u32 %v61, 4294901760
    %292 = vmatpush.msra.mxu0 %v291
    %v293 = vand.u32 %v60, 4294901760
    %294 = vmatpush.msra.mxu0 %v293
    %v295 = vand.u32 %v59, 4294901760
    %296 = vmatpush.msra.mxu0 %v295
    %v297 = vand.u32 %v58, 4294901760
    %298 = vmatpush.msra.mxu0 %v297
    %v299 = vand.u32 %v57, 4294901760
    %300 = vmatpush.msra.mxu0 %v299
    %v301 = vand.u32 %v55, 4294901760
    %v302 = vsub.f32 %v55, %v301
    %v303 = vand.u32 %v302, 4294901760
    %304 = vmatmul.f32.gmra.mxu0 %v303
    %v305 = vpop.f32.mrf.mxu0
    %v306 = vadd.f32 %v267, %v305
    %307 = vdwg.mxu0
    %v308 = vand.u32 %v72, 4294901760
    %v309 = vsub.f32 %v72, %v308
    %v310 = vand.u32 %v309, 4294901760
    %311 = vmatpush.msra.mxu0 %v310
    %v312 = vand.u32 %v71, 4294901760
    %v313 = vsub.f32 %v71, %v312
    %v314 = vand.u32 %v313, 4294901760
    %315 = vmatpush.msra.mxu0 %v314
    %v316 = vand.u32 %v70, 4294901760
    %v317 = vsub.f32 %v70, %v316
    %v318 = vand.u32 %v317, 4294901760
    %319 = vmatpush.msra.mxu0 %v318
    %v320 = vand.u32 %v69, 4294901760
    %v321 = vsub.f32 %v69, %v320
    %v322 = vand.u32 %v321, 4294901760
    %323 = vmatpush.msra.mxu0 %v322
    %v324 = vand.u32 %v68, 4294901760
    %v325 = vsub.f32 %v68, %v324
    %v326 = vand.u32 %v325, 4294901760
    %327 = vmatpush.msra.mxu0 %v326
    %v328 = vand.u32 %v67, 4294901760
    %v329 = vsub.f32 %v67, %v328
    %v330 = vand.u32 %v329, 4294901760
    %331 = vmatpush.msra.mxu0 %v330
    %v332 = vand.u32 %v66, 4294901760
    %v333 = vsub.f32 %v66, %v332
    %v334 = vand.u32 %v333, 4294901760
    %335 = vmatpush.msra.mxu0 %v334
    %v336 = vand.u32 %v65, 4294901760
    %v337 = vsub.f32 %v65, %v336
    %v338 = vand.u32 %v337, 4294901760
    %339 = vmatpush.msra.mxu0 %v338
    %v340 = vand.u32 %v64, 4294901760
    %v341 = vsub.f32 %v64, %v340
    %v342 = vand.u32 %v341, 4294901760
    %343 = vmatpush.msra.mxu0 %v342
    %v344 = vand.u32 %v63, 4294901760
    %v345 = vsub.f32 %v63, %v344
    %v346 = vand.u32 %v345, 4294901760
    %347 = vmatpush.msra.mxu0 %v346
    %v348 = vand.u32 %v62, 4294901760
    %v349 = vsub.f32 %v62, %v348
    %v350 = vand.u32 %v349, 4294901760
    %351 = vmatpush.msra.mxu0 %v350
    %v352 = vand.u32 %v61, 4294901760
    %v353 = vsub.f32 %v61, %v352
    %v354 = vand.u32 %v353, 4294901760
    %355 = vmatpush.msra.mxu0 %v354
    %v356 = vand.u32 %v60, 4294901760
    %v357 = vsub.f32 %v60, %v356
    %v358 = vand.u32 %v357, 4294901760
    %359 = vmatpush.msra.mxu0 %v358
    %v360 = vand.u32 %v59, 4294901760
    %v361 = vsub.f32 %v59, %v360
    %v362 = vand.u32 %v361, 4294901760
    %363 = vmatpush.msra.mxu0 %v362
    %v364 = vand.u32 %v58, 4294901760
    %v365 = vsub.f32 %v58, %v364
    %v366 = vand.u32 %v365, 4294901760
    %367 = vmatpush.msra.mxu0 %v366
    %v368 = vand.u32 %v57, 4294901760
    %v369 = vsub.f32 %v57, %v368
    %v370 = vand.u32 %v369, 4294901760
    %371 = vmatpush.msra.mxu0 %v370
    %v372 = vand.u32 %v55, 4294901760
    %373 = vmatmul.f32.gmra.mxu0 %v372
    %v374 = vpop.f32.mrf.mxu0
    %v375 = vadd.f32 %v306, %v374
    %376 = vdwg.mxu0
    %v377 = vand.u32 %v72, 4294901760
    %378 = vmatpush.msra.mxu0 %v377
    %v379 = vand.u32 %v71, 4294901760
    %380 = vmatpush.msra.mxu0 %v379
    %v381 = vand.u32 %v70, 4294901760
    %382 = vmatpush.msra.mxu0 %v381
    %v383 = vand.u32 %v69, 4294901760
    %384 = vmatpush.msra.mxu0 %v383
    %v385 = vand.u32 %v68, 4294901760
    %386 = vmatpush.msra.mxu0 %v385
    %v387 = vand.u32 %v67, 4294901760
    %388 = vmatpush.msra.mxu0 %v387
    %v389 = vand.u32 %v66, 4294901760
    %390 = vmatpush.msra.mxu0 %v389
    %v391 = vand.u32 %v65, 4294901760
    %392 = vmatpush.msra.mxu0 %v391
    %v393 = vand.u32 %v64, 4294901760
    %394 = vmatpush.msra.mxu0 %v393
    %v395 = vand.u32 %v63, 4294901760
    %396 = vmatpush.msra.mxu0 %v395
    %v397 = vand.u32 %v62, 4294901760
    %398 = vmatpush.msra.mxu0 %v397
    %v399 = vand.u32 %v61, 4294901760
    %400 = vmatpush.msra.mxu0 %v399
    %v401 = vand.u32 %v60, 4294901760
    %402 = vmatpush.msra.mxu0 %v401
    %v403 = vand.u32 %v59, 4294901760
    %404 = vmatpush.msra.mxu0 %v403
    %v405 = vand.u32 %v58, 4294901760
    %406 = vmatpush.msra.mxu0 %v405
    %v407 = vand.u32 %v57, 4294901760
    %408 = vmatpush.msra.mxu0 %v407
    %v409 = vand.u32 %v55, 4294901760
    %410 = vmatmul.f32.gmra.mxu0 %v409
    %v411 = vpop.f32.mrf.mxu0
    %v412 = vadd.f32 %v375, %v411
    %413 = vdwg.mxu0
    %v414 = vadd.f32 %v56, %v412
    %415 = vst [vmem:[#allocation7] sm:$0x1] %v414
    // Predicated region
    $region26: #{tpu_custom_call.1} parent=1 // pred_check
      _
    $region27: #{tpu_custom_call.1} parent=1 // pred_check_branch
      %417 = sbr.rel (0) target = $region29
    $region28: #{tpu_custom_call.1} parent=1 // pred_region
      %419 = vsyncadd [#allocation4], 0
      %s421 = sshll.u32 [#allocation7], 4
      %s422 = int_to_ptr.vmem [resolvable:$true] %s421
      %s423 = sshll.u32 %s3, 4
      %s424 = int_to_ptr.hbm [resolvable:$true] %s423
      %426 = dma.vmem_to_hbm [thread:$0]  %s422, 16, %s424, [#allocation4]
    $region29: #{tpu_custom_call.1} parent=1 // pred_fallthru
      _
    // Predicated region
    $region30: #{tpu_custom_call.1} parent=1 // pred_check
      _
    $region31: #{tpu_custom_call.1} parent=1 // pred_check_branch
      %428 = sbr.rel (0) target = $region33
    $region32: #{tpu_custom_call.1} parent=1 // pred_region
      %430 = dma.done [#allocation4], 16
    $region33: #{tpu_custom_call.1} parent=1 // pred_fallthru
      _
    %431 = vsyncpa [#allocation3], 1
    %432 = vsyncpa [#allocation6], 1
    %433 = vsyncpa [#allocation4], 1

</llo_original>
